<compile_context>
chip_gen: v7x
topology: tpu7x:2x2x1
jax: 0.10.0
libtpu: 0.0.40
codegen_flags: <defaults>
</compile_context>

<pallas_src>
import jax
import jax.numpy as jnp
from jax.experimental import pallas as pl
from jax.experimental.pallas import tpu as pltpu

_LANES = 128
_SUBLANES = 8
_MAX_TILE_ROWS = 1024  # 1024 x 128 x 4B = 512 KiB per f32 block buffer


def _identity_copy_kernel(x_ref, o_ref):
    o_ref[...] = x_ref[...]


def _pick_tile_rows(rows: int) -> int:
    # Target ~512 KiB (f32) per block buffer; for small inputs the whole slab
    # is a single block (block == array dims is always legal).
    return rows if rows <= _MAX_TILE_ROWS else _MAX_TILE_ROWS


def _copy_slab(slab):
    rows, lanes = slab.shape
    tile_r = _pick_tile_rows(rows)
    grid = (pl.cdiv(rows, tile_r),)
    return pl.pallas_call(
        _identity_copy_kernel,
        out_shape=jax.ShapeDtypeStruct((rows, lanes), slab.dtype),
        grid_spec=pltpu.PrefetchScalarGridSpec(
            num_scalar_prefetch=0,
            grid=grid,
            in_specs=[pl.BlockSpec((tile_r, lanes), lambda i: (i, 0))],
            out_specs=pl.BlockSpec((tile_r, lanes), lambda i: (i, 0)),
        ),
        compiler_params=pltpu.CompilerParams(
            # One independent row axis: shard across TCs on v7x, harmless on
            # single-TC v5e/v6e.
            dimension_semantics=("parallel",),
            vmem_limit_bytes=32 * 1024 * 1024,
        ),
    )(slab)


@jax.jit
def _identity_forward(x):
    shape = x.shape
    total = 1
    for d in shape:
        total *= d

    if total % _LANES == 0:
        # Common case (vision NCHW inputs): pure reshape, fused under jit.
        rows = total // _LANES
        slab = jnp.reshape(x, (rows, _LANES))
        out = _copy_slab(slab)
        return jnp.reshape(out, shape)

    # Rare fallback: pad to a multiple of 8*128 elements so the slab is both
    # lane-dense and 8-sublane aligned (unmasked full-vreg stores), then slice
    # the padding back off.
    chunk = _SUBLANES * _LANES
    padded = pl.cdiv(total, chunk) * chunk
    flat = jnp.reshape(x, (total,))
    flat = jnp.pad(flat, (0, padded - total))
    slab = jnp.reshape(flat, (padded // _LANES, _LANES))
    out = _copy_slab(slab)
    return jnp.reshape(jnp.reshape(out, (padded,))[:total], shape)


class Backbone:
    """JAX/Pallas mirror of the dassl Backbone abstract base class."""

    def __init__(self):
        # No parameters — matches the PyTorch __init__.
        self._state = {}

    def forward(self, x=None):
        # The reference forward takes no tensors and returns None.
        if x is None:
            return None
        return _identity_forward(x)

    def __call__(self, x=None):
        return self.forward(x)

    @property
    def out_features(self):
        """Output feature dimension."""
        if self.__dict__.get("_out_features") is None:
            return None
        return self._out_features


if __name__ == "__main__":
    key = jax.random.PRNGKey(0)
    model = Backbone()

    # Faithful abstract-base semantics: no tensor args -> None.
    assert model() is None
    assert model.out_features is None

    # Primary example: small NCHW vision-style input [N=2, C=4, H=16, W=16].
    x = jax.random.normal(key, (2, 4, 16, 16), dtype=jnp.float32)
    y = jax.block_until_ready(model(x))
    assert y.shape == x.shape and y.dtype == x.dtype
    assert bool(jnp.allclose(y, x))

    # Still-small input exercising the multi-block pipelined path:
    # 262144 elems -> 2048 rows x 128 lanes -> two 1024-row tiles, parallel grid.
    x2 = jax.random.normal(key, (2, 4, 64, 512), dtype=jnp.float32)
    y2 = jax.block_until_ready(model(x2))
    assert y2.shape == x2.shape and bool(jnp.allclose(y2, x2))

    # Non-128-divisible fallback (pad + slice) path.
    x3 = jax.random.normal(key, (2, 3, 7, 11), dtype=jnp.float32)
    y3 = jax.block_until_ready(model(x3))
    assert y3.shape == x3.shape and bool(jnp.allclose(y3, x3))

    print("KERNEL_OK")
</pallas_src>

<mosaic_0001>
module attributes {stable_mosaic.version = 11 : i64} {
  func.func @_identity_copy_kernel(%arg0: i32, %arg1: memref<16x128xf32, #tpu.memory_space<vmem>>, %arg2: memref<16x128xf32, #tpu.memory_space<vmem>>) attributes {dimension_semantics = [#tpu.dimension_semantics<parallel>], iteration_bounds = array<i64: 1>, scalar_prefetch = 0 : i64, scratch_operands = 0 : i64, tpu.core_type = #tpu.core_type<tc>, window_params = [{transform_indices = @transform_0, window_bounds = array<i64: 16, 128>}, {transform_indices = @transform_1, window_bounds = array<i64: 16, 128>}]} {
    %c0 = arith.constant 0 : index
    %c0_0 = arith.constant 0 : index
    %0 = vector.load %arg1[%c0, %c0_0] : memref<16x128xf32, #tpu.memory_space<vmem>>, vector<16x128xf32>
    %c0_1 = arith.constant 0 : index
    %c0_2 = arith.constant 0 : index
    %1 = vector.load %arg2[%c0_1, %c0_2] : memref<16x128xf32, #tpu.memory_space<vmem>>, vector<16x128xf32>
    tpu.vector_store %arg2[%c0_1, %c0_2], %0 {strides = array<i32>} : memref<16x128xf32, #tpu.memory_space<vmem>>, vector<16x128xf32>,
    return
  }
  func.func @transform_0(%arg0: i32) -> (i32, i32) {
    %c0_i32 = arith.constant 0 : i32
    %c0_i32_0 = arith.constant 0 : i32
    return %arg0, %c0_i32 : i32, i32
  }
  func.func @transform_1(%arg0: i32) -> (i32, i32) {
    %c0_i32 = arith.constant 0 : i32
    %c0_i32_0 = arith.constant 0 : i32
    return %arg0, %c0_i32 : i32, i32
  }
}

</mosaic_0001>

<llo_original>
// kernel: _identity_forward.1
$region0: #{_identity_forward.1}
  #allocation0 [shape = 'u32[]', space=smem, size = 0x4, offset = 0x4, fixed_abs, tag = 'smem constant byte address 0x4 - core index']
  #allocation1 [shape = 'u32[144,128]{1,0:T(1,128)}', space=vmem, size = 0x12000, scoped, tag = 'internal scratch']
  %s0 = inlined_call_operand.vmem [shape: f32[16,128], index: 0, kind: input, shape index: {}]
  %s1 = inlined_call_operand.vmem [shape: f32[16,128], index: 1, kind: output, shape index: {}]
  %s2 = sld [smem:[#allocation0]]
  $region14: #{_identity_forward.1} parent=0
    _
  %s4 = ssub.s32 1, %s2
  %s5 = scalar_select 0, %s4, %s2
  // Predicated region
  $region2: #{_identity_forward.1} parent=0 // pred_check
    _
  $region3: #{_identity_forward.1} parent=0 // pred_check_branch
    %7 = sbr.rel (0) target = $region5
  $region4: #{_identity_forward.1} parent=0 // pred_region
    _
  $region5: #{_identity_forward.1} parent=0 // pred_fallthru
    _
  %v8 = vld [vmem:[%s0] sm:$0xff]
  %v9 = vld [vmem:[%s0 + $0x8] sm:$0xff]
  %10 = vst [vmem:[%s1] sm:$0xff] %v8
  %11 = vst [vmem:[%s1 + $0x8] sm:$0xff] %v9
  // Predicated region
  $region6: #{_identity_forward.1} parent=0 // pred_check
    _
  $region7: #{_identity_forward.1} parent=0 // pred_check_branch
    %13 = sbr.rel (0) target = $region9
  $region8: #{_identity_forward.1} parent=0 // pred_region
    _
  $region9: #{_identity_forward.1} parent=0 // pred_fallthru
    _
  // Predicated region
  $region10: #{_identity_forward.1} parent=0 // pred_check
    _
  $region11: #{_identity_forward.1} parent=0 // pred_check_branch
    %15 = sbr.rel (0) target = $region13
  $region12: #{_identity_forward.1} parent=0 // pred_region
    _
  $region13: #{_identity_forward.1} parent=0 // pred_fallthru
    _

</llo_original>
